<compile_context>
chip_gen: v7x
topology: tpu7x:2x2x1
jax: 0.10.0
libtpu: 0.0.40
codegen_flags: <defaults>
</compile_context>

<pallas_src>
import functools

import jax
import jax.numpy as jnp
from jax.experimental import pallas as pl
from jax.experimental.pallas import tpu as pltpu

_LANES = 128


def _round_up(x, m):
    return ((x + m - 1) // m) * m


def _lane_chunk_sum(x, n_chunks):
    """(BC, n_chunks*128) -> (BC, 128) via pure VALU adds (no cross-lane XLU)."""
    acc = x[:, 0:_LANES]
    for c in range(1, n_chunks):
        acc = acc + x[:, c * _LANES:(c + 1) * _LANES]
    return acc


def _tversky_sums_kernel(pred_ref, label_ref, s_pl_ref, s_p_ref, s_l_ref, *,
                         n_valid, tile_n, steps_per_split, needs_mask):
    p_id = pl.program_id(0)   # parallel split (sharded across TCs on v7x)
    k = pl.program_id(1)      # reduction step within this split

    @pl.when(k == 0)
    def _():
        s_pl_ref[...] = jnp.zeros_like(s_pl_ref)
        s_p_ref[...] = jnp.zeros_like(s_p_ref)
        s_l_ref[...] = jnp.zeros_like(s_l_ref)

    p_blk = pred_ref[...]                           # (BC, tile_n) f32
    l_blk = label_ref[...].astype(jnp.float32)      # int8 -> f32 in VMEM

    if needs_mask:
        # Global tile index (the index_map clamps the DMA; mask with the
        # UNclamped index so fully-out-of-range tiles contribute zero).
        g = p_id * steps_per_split + k
        start = g * tile_n
        lane = jax.lax.broadcasted_iota(jnp.int32, p_blk.shape, 1)
        valid = lane < (n_valid - start)
        p_blk = jnp.where(valid, p_blk, 0.0)        # where: OOB NaNs can't leak
        l_blk = jnp.where(valid, l_blk, 0.0)

    prod = p_blk * l_blk
    n_chunks = tile_n // _LANES
    s_pl_ref[...] += _lane_chunk_sum(prod, n_chunks)[None]   # sum(p*l) partials
    s_p_ref[...] += _lane_chunk_sum(p_blk, n_chunks)[None]   # sum(p)   partials
    s_l_ref[...] += _lane_chunk_sum(l_blk, n_chunks)[None]   # sum(l)   partials


def tversky_loss(pred, label, class_mask, class_weights,
                 alpha=0.5, beta=0.5, epsilon=1e-6, tile_n=None,
                 vmem_budget_bytes=12 * 1024 * 1024):
    """Pallas implementation of TverskyLoss.forward.

    pred:          (B, C, X, Y, Z) float32 probabilities.
    label:         (B, C, X, Y, Z) bool.
    class_mask:    (B, C) float32.
    class_weights: (B, C) float32.
    Returns a scalar float32 loss.
    """
    if pred.shape != label.shape:
        raise ValueError(
            f"Expected pred shape ({pred.shape}) to equal label shape ({label.shape}).")
    if label.dtype != jnp.bool_:
        raise ValueError(f"TverskyLoss expects boolean label. Got '{label.dtype}'.")

    B, C = pred.shape[0], pred.shape[1]
    n_classes = C
    BC = B * C

    # Reshape is metadata-only; no f32/label-padded copies are materialized.
    pred_f = pred.reshape(BC, -1).astype(jnp.float32)   # no-op if already f32
    label_i = label.reshape(BC, -1).astype(jnp.int8)    # 1 byte/elem in HBM
    N = pred_f.shape[1]

    # VMEM-aware tile size: 2 pipeline buffers x (pred f32 + label int8),
    # accounting for sublane padding (8 for f32, 32 for int8).
    if tile_n is None:
        per_n = 2 * (4 * _round_up(BC, 8) + _round_up(BC, 32))
        tile_n = (vmem_budget_bytes // per_n) // _LANES * _LANES
    tile_n = max(_LANES, min(int(tile_n) // _LANES * _LANES, 8192,
                             _round_up(N, _LANES)))

    n_tiles = pl.cdiv(N, tile_n)
    n_splits = 2 if n_tiles >= 2 else 1            # v7x megacore; no-op on 1-TC chips
    steps = pl.cdiv(n_tiles, n_splits)
    needs_mask = (N % tile_n != 0) or (n_splits * steps != n_tiles)
    last_tile = n_tiles - 1

    def data_idx(p, k):
        # Clamp so over-run tiles of the last split re-read a valid block
        # (their contribution is zeroed by the in-kernel mask).
        return (0, jnp.minimum(p * steps + k, last_tile))

    kernel = functools.partial(
        _tversky_sums_kernel, n_valid=N, tile_n=tile_n,
        steps_per_split=steps, needs_mask=needs_mask)

    out_sds = jax.ShapeDtypeStruct((n_splits, BC, _LANES), jnp.float32)
    out_spec = pl.BlockSpec((1, BC, _LANES), lambda p, k: (p, 0, 0))

    cost = pl.CostEstimate(
        flops=5 * BC * N,
        transcendentals=0,
        bytes_accessed=BC * N * 5 + 3 * n_splits * BC * _LANES * 4)

    s_pl, s_p, s_l = pl.pallas_call(
        kernel,
        out_shape=(out_sds, out_sds, out_sds),
        grid_spec=pltpu.PrefetchScalarGridSpec(
            num_scalar_prefetch=0,
            grid=(n_splits, steps),
            in_specs=[
                pl.BlockSpec((BC, tile_n), data_idx),   # pred  (f32, 4 B/elem)
                pl.BlockSpec((BC, tile_n), data_idx),   # label (int8, 1 B/elem)
            ],
            out_specs=(out_spec, out_spec, out_spec),
        ),
        compiler_params=pltpu.CompilerParams(
            dimension_semantics=("parallel", "arbitrary")),
        cost_estimate=cost,
    )(pred_f, label_i)

    # Tiny epilogue in plain JAX (matches the PyTorch module's final math).
    TP = jnp.sum(s_pl, axis=(0, 2)).reshape(B, C)
    SP = jnp.sum(s_p, axis=(0, 2)).reshape(B, C)
    SL = jnp.sum(s_l, axis=(0, 2)).reshape(B, C)
    FP = SP - TP
    FN = SL - TP
    inner = (TP + epsilon) / (TP + alpha * FN + beta * FP + epsilon)
    inner = class_mask.astype(jnp.float32) * class_weights.astype(jnp.float32) * inner
    loss = n_classes - jnp.sum(inner, axis=1)
    return jnp.mean(loss)


def _tversky_loss_ref(pred, label, class_mask, class_weights,
                      alpha=0.5, beta=0.5, epsilon=1e-6):
    """Pure-JAX reference matching the PyTorch module."""
    B, C = pred.shape[0], pred.shape[1]
    p = pred.reshape(B, C, -1)
    l = label.reshape(B, C, -1).astype(pred.dtype)
    TP = jnp.sum(p * l, axis=2)
    FP = jnp.sum(p * (1.0 - l), axis=2)
    FN = jnp.sum((1.0 - p) * l, axis=2)
    inner = (TP + epsilon) / (TP + alpha * FN + beta * FP + epsilon)
    inner = class_mask * class_weights * inner
    return jnp.mean(C - jnp.sum(inner, axis=1))


if __name__ == "__main__":
    key = jax.random.PRNGKey(0)
    k1, k2, k3, k4, k5, k6 = jax.random.split(key, 6)

    # --- main test: B x C x X x Y x Z, N divides tile exactly ---
    B, C, X, Y, Z = 2, 4, 8, 8, 8
    pred = jax.nn.softmax(jax.random.normal(k1, (B, C, X, Y, Z), jnp.float32), axis=1)
    label = jax.random.bernoulli(k2, 0.3, (B, C, X, Y, Z))          # bool
    class_mask = jax.random.bernoulli(k3, 0.8, (B, C)).astype(jnp.float32)
    class_weights = jax.random.uniform(k4, (B, C), jnp.float32, 0.5, 1.5)

    loss = tversky_loss(pred, label, class_mask, class_weights)
    jax.block_until_ready(loss)
    ref = _tversky_loss_ref(pred, label, class_mask, class_weights)
    assert jnp.allclose(loss, ref, atol=1e-5, rtol=1e-5), (loss, ref)

    # --- ragged test: exercises tail masking + 2-way parallel split + clamp ---
    B2, C2, X2, Y2, Z2 = 1, 3, 5, 7, 9          # N = 315, not a multiple of 128
    pred2 = jax.nn.softmax(jax.random.normal(k5, (B2, C2, X2, Y2, Z2), jnp.float32), axis=1)
    label2 = jax.random.bernoulli(k6, 0.4, (B2, C2, X2, Y2, Z2))
    mask2 = jnp.ones((B2, C2), jnp.float32)
    w2 = jnp.full((B2, C2), 0.75, jnp.float32)

    loss2 = tversky_loss(pred2, label2, mask2, w2, tile_n=128)
    jax.block_until_ready(loss2)
    ref2 = _tversky_loss_ref(pred2, label2, mask2, w2)
    assert jnp.allclose(loss2, ref2, atol=1e-5, rtol=1e-5), (loss2, ref2)

    print("KERNEL_OK")
</pallas_src>

<mosaic_0001>
module attributes {stable_mosaic.version = 11 : i64} {
  func.func @_tversky_sums_kernel(%arg0: i32, %arg1: i32, %arg2: memref<8x512xf32, #tpu.memory_space<vmem>>, %arg3: memref<8x512xi8, #tpu.memory_space<vmem>>, %arg4: memref<1x8x128xf32, #tpu.memory_space<vmem>>, %arg5: memref<1x8x128xf32, #tpu.memory_space<vmem>>, %arg6: memref<1x8x128xf32, #tpu.memory_space<vmem>>) attributes {dimension_semantics = [#tpu.dimension_semantics<parallel>, #tpu.dimension_semantics<arbitrary>], iteration_bounds = array<i64: 1, 1>, scalar_prefetch = 0 : i64, scratch_operands = 0 : i64, tpu.core_type = #tpu.core_type<tc>, window_params = [{transform_indices = @transform_0, window_bounds = array<i64: 8, 512>}, {transform_indices = @transform_1, window_bounds = array<i64: 8, 512>}, {transform_indices = @transform_2, window_bounds = array<i64: 1, 8, 128>}, {transform_indices = @transform_3, window_bounds = array<i64: 1, 8, 128>}, {transform_indices = @transform_4, window_bounds = array<i64: 1, 8, 128>}]} {
    %c0_i32 = arith.constant 0 : i32
    %0 = arith.cmpi eq, %arg1, %c0_i32 : i32
    %1 = arith.extui %0 : i1 to i32
    %c0_i32_0 = arith.constant 0 : i32
    %2 = arith.cmpi ne, %1, %c0_i32_0 : i32
    scf.if %2 {
      %cst = arith.constant 0.000000e+00 : f32
      %40 = vector.broadcast %cst : f32 to vector<1x8x128xf32>
      %c0_22 = arith.constant 0 : index
      %c0_23 = arith.constant 0 : index
      %c0_24 = arith.constant 0 : index
      %41 = vector.load %arg4[%c0_22, %c0_23, %c0_24] : memref<1x8x128xf32, #tpu.memory_space<vmem>>, vector<1x8x128xf32>
      tpu.vector_store %arg4[%c0_22, %c0_23, %c0_24], %40 {strides = array<i32>} : memref<1x8x128xf32, #tpu.memory_space<vmem>>, vector<1x8x128xf32>,
      %cst_25 = arith.constant 0.000000e+00 : f32
      %42 = vector.broadcast %cst_25 : f32 to vector<1x8x128xf32>
      %c0_26 = arith.constant 0 : index
      %c0_27 = arith.constant 0 : index
      %c0_28 = arith.constant 0 : index
      %43 = vector.load %arg5[%c0_26, %c0_27, %c0_28] : memref<1x8x128xf32, #tpu.memory_space<vmem>>, vector<1x8x128xf32>
      tpu.vector_store %arg5[%c0_26, %c0_27, %c0_28], %42 {strides = array<i32>} : memref<1x8x128xf32, #tpu.memory_space<vmem>>, vector<1x8x128xf32>,
      %cst_29 = arith.constant 0.000000e+00 : f32
      %44 = vector.broadcast %cst_29 : f32 to vector<1x8x128xf32>
      %c0_30 = arith.constant 0 : index
      %c0_31 = arith.constant 0 : index
      %c0_32 = arith.constant 0 : index
      %45 = vector.load %arg6[%c0_30, %c0_31, %c0_32] : memref<1x8x128xf32, #tpu.memory_space<vmem>>, vector<1x8x128xf32>
      tpu.vector_store %arg6[%c0_30, %c0_31, %c0_32], %44 {strides = array<i32>} : memref<1x8x128xf32, #tpu.memory_space<vmem>>, vector<1x8x128xf32>,
    } else {
    }
    %c0 = arith.constant 0 : index
    %c0_1 = arith.constant 0 : index
    %3 = vector.load %arg2[%c0, %c0_1] : memref<8x512xf32, #tpu.memory_space<vmem>>, vector<8x512xf32>
    %c0_2 = arith.constant 0 : index
    %c0_3 = arith.constant 0 : index
    %4 = vector.load %arg3[%c0_2, %c0_3] : memref<8x512xi8, #tpu.memory_space<vmem>>, vector<8x512xi8>
    %5 = arith.sitofp %4 : vector<8x512xi8> to vector<8x512xf32>
    %6 = arith.mulf %3, %5 : vector<8x512xf32>
    %c0_4 = arith.constant 0 : index
    %c0_5 = arith.constant 0 : index
    %c0_6 = arith.constant 0 : index
    %7 = vector.load %arg4[%c0_4, %c0_5, %c0_6] : memref<1x8x128xf32, #tpu.memory_space<vmem>>, vector<1x8x128xf32>
    %8 = vector.extract_strided_slice %6 {offsets = [0, 0], sizes = [8, 128], strides = [1, 1]} : vector<8x512xf32> to vector<8x128xf32>
    %9 = vector.extract_strided_slice %6 {offsets = [0, 128], sizes = [8, 128], strides = [1, 1]} : vector<8x512xf32> to vector<8x128xf32>
    %10 = arith.addf %8, %9 : vector<8x128xf32>
    %11 = vector.extract_strided_slice %6 {offsets = [0, 256], sizes = [8, 128], strides = [1, 1]} : vector<8x512xf32> to vector<8x128xf32>
    %12 = arith.addf %10, %11 : vector<8x128xf32>
    %13 = vector.extract_strided_slice %6 {offsets = [0, 384], sizes = [8, 128], strides = [1, 1]} : vector<8x512xf32> to vector<8x128xf32>
    %14 = arith.addf %12, %13 : vector<8x128xf32>
    %15 = vector.shape_cast %14 : vector<8x128xf32> to vector<1x8x128xf32>
    %16 = arith.addf %7, %15 : vector<1x8x128xf32>
    %c0_7 = arith.constant 0 : index
    %c0_8 = arith.constant 0 : index
    %c0_9 = arith.constant 0 : index
    %17 = vector.load %arg4[%c0_7, %c0_8, %c0_9] : memref<1x8x128xf32, #tpu.memory_space<vmem>>, vector<1x8x128xf32>
    tpu.vector_store %arg4[%c0_7, %c0_8, %c0_9], %16 {strides = array<i32>} : memref<1x8x128xf32, #tpu.memory_space<vmem>>, vector<1x8x128xf32>,
    %c0_10 = arith.constant 0 : index
    %c0_11 = arith.constant 0 : index
    %c0_12 = arith.constant 0 : index
    %18 = vector.load %arg5[%c0_10, %c0_11, %c0_12] : memref<1x8x128xf32, #tpu.memory_space<vmem>>, vector<1x8x128xf32>
    %19 = vector.extract_strided_slice %3 {offsets = [0, 0], sizes = [8, 128], strides = [1, 1]} : vector<8x512xf32> to vector<8x128xf32>
    %20 = vector.extract_strided_slice %3 {offsets = [0, 128], sizes = [8, 128], strides = [1, 1]} : vector<8x512xf32> to vector<8x128xf32>
    %21 = arith.addf %19, %20 : vector<8x128xf32>
    %22 = vector.extract_strided_slice %3 {offsets = [0, 256], sizes = [8, 128], strides = [1, 1]} : vector<8x512xf32> to vector<8x128xf32>
    %23 = arith.addf %21, %22 : vector<8x128xf32>
    %24 = vector.extract_strided_slice %3 {offsets = [0, 384], sizes = [8, 128], strides = [1, 1]} : vector<8x512xf32> to vector<8x128xf32>
    %25 = arith.addf %23, %24 : vector<8x128xf32>
    %26 = vector.shape_cast %25 : vector<8x128xf32> to vector<1x8x128xf32>
    %27 = arith.addf %18, %26 : vector<1x8x128xf32>
    %c0_13 = arith.constant 0 : index
    %c0_14 = arith.constant 0 : index
    %c0_15 = arith.constant 0 : index
    %28 = vector.load %arg5[%c0_13, %c0_14, %c0_15] : memref<1x8x128xf32, #tpu.memory_space<vmem>>, vector<1x8x128xf32>
    tpu.vector_store %arg5[%c0_13, %c0_14, %c0_15], %27 {strides = array<i32>} : memref<1x8x128xf32, #tpu.memory_space<vmem>>, vector<1x8x128xf32>,
    %c0_16 = arith.constant 0 : index
    %c0_17 = arith.constant 0 : index
    %c0_18 = arith.constant 0 : index
    %29 = vector.load %arg6[%c0_16, %c0_17, %c0_18] : memref<1x8x128xf32, #tpu.memory_space<vmem>>, vector<1x8x128xf32>
    %30 = vector.extract_strided_slice %5 {offsets = [0, 0], sizes = [8, 128], strides = [1, 1]} : vector<8x512xf32> to vector<8x128xf32>
    %31 = vector.extract_strided_slice %5 {offsets = [0, 128], sizes = [8, 128], strides = [1, 1]} : vector<8x512xf32> to vector<8x128xf32>
    %32 = arith.addf %30, %31 : vector<8x128xf32>
    %33 = vector.extract_strided_slice %5 {offsets = [0, 256], sizes = [8, 128], strides = [1, 1]} : vector<8x512xf32> to vector<8x128xf32>
    %34 = arith.addf %32, %33 : vector<8x128xf32>
    %35 = vector.extract_strided_slice %5 {offsets = [0, 384], sizes = [8, 128], strides = [1, 1]} : vector<8x512xf32> to vector<8x128xf32>
    %36 = arith.addf %34, %35 : vector<8x128xf32>
    %37 = vector.shape_cast %36 : vector<8x128xf32> to vector<1x8x128xf32>
    %38 = arith.addf %29, %37 : vector<1x8x128xf32>
    %c0_19 = arith.constant 0 : index
    %c0_20 = arith.constant 0 : index
    %c0_21 = arith.constant 0 : index
    %39 = vector.load %arg6[%c0_19, %c0_20, %c0_21] : memref<1x8x128xf32, #tpu.memory_space<vmem>>, vector<1x8x128xf32>
    tpu.vector_store %arg6[%c0_19, %c0_20, %c0_21], %38 {strides = array<i32>} : memref<1x8x128xf32, #tpu.memory_space<vmem>>, vector<1x8x128xf32>,
    return
  }
  func.func @transform_0(%arg0: i32, %arg1: i32) -> (i32, i32) {
    %c1_i32 = arith.constant 1 : i32
    %0 = arith.muli %arg0, %c1_i32 : i32
    %1 = arith.addi %0, %arg1 : i32
    %c0_i32 = arith.constant 0 : i32
    %2 = arith.minsi %1, %c0_i32 : i32
    %c0_i32_0 = arith.constant 0 : i32
    %c0_i32_1 = arith.constant 0 : i32
    return %c0_i32_0, %2 : i32, i32
  }
  func.func @transform_1(%arg0: i32, %arg1: i32) -> (i32, i32) {
    %c1_i32 = arith.constant 1 : i32
    %0 = arith.muli %arg0, %c1_i32 : i32
    %1 = arith.addi %0, %arg1 : i32
    %c0_i32 = arith.constant 0 : i32
    %2 = arith.minsi %1, %c0_i32 : i32
    %c0_i32_0 = arith.constant 0 : i32
    %c0_i32_1 = arith.constant 0 : i32
    return %c0_i32_0, %2 : i32, i32
  }
  func.func @transform_2(%arg0: i32, %arg1: i32) -> (i32, i32, i32) {
    %c0_i32 = arith.constant 0 : i32
    %c0_i32_0 = arith.constant 0 : i32
    %c0_i32_1 = arith.constant 0 : i32
    return %arg0, %c0_i32, %c0_i32_0 : i32, i32, i32
  }
  func.func @transform_3(%arg0: i32, %arg1: i32) -> (i32, i32, i32) {
    %c0_i32 = arith.constant 0 : i32
    %c0_i32_0 = arith.constant 0 : i32
    %c0_i32_1 = arith.constant 0 : i32
    return %arg0, %c0_i32, %c0_i32_0 : i32, i32, i32
  }
  func.func @transform_4(%arg0: i32, %arg1: i32) -> (i32, i32, i32) {
    %c0_i32 = arith.constant 0 : i32
    %c0_i32_0 = arith.constant 0 : i32
    %c0_i32_1 = arith.constant 0 : i32
    return %arg0, %c0_i32, %c0_i32_0 : i32, i32, i32
  }
}

</mosaic_0001>

<llo_original>
// kernel: tpu_custom_call.1
$region0: #{tpu_custom_call.1}
  #allocation0 [shape = 'u32[]', space=smem, size = 0x4, offset = 0x4, fixed_abs, tag = 'smem constant byte address 0x4 - core index']
  #allocation1 [shape = 'u32[144,128]{1,0:T(1,128)}', space=vmem, size = 0x12000, scoped, tag = 'internal scratch']
  %s0 = inlined_call_operand.hbm [shape: f32[8,512], index: 0, kind: input, shape index: {}]
  %s1 = inlined_call_operand.hbm [shape: s8[8,512], index: 1, kind: input, shape index: {}]
  %s2 = inlined_call_operand.hbm [shape: f32[1,8,128], index: 2, kind: output, shape index: {0}]
  %s3 = inlined_call_operand.hbm [shape: f32[1,8,128], index: 3, kind: output, shape index: {1}]
  %s4 = inlined_call_operand.hbm [shape: f32[1,8,128], index: 4, kind: output, shape index: {2}]
  %5 = xla_tuple %s2, %s3, %s4
  %s6 = sld [smem:[#allocation0]]
  $region46: #{tpu_custom_call.1} parent=0
    _
  %s8 = ssub.s32 1, %s6
  %s9 = scalar_select 0, %s8, %s6
  $region1: #{tpu_custom_call.1} parent=0
    #allocation2 [shape = 'u8[16384]{0}', space=vmem, size = 0x4000, scoped, tag = 'input window, operand 0, single buffered']
    #allocation3 [shape = 's32[1]{0}', space=sflag, size = 0x4, scoped, tag = 'scoped memory for tpu_custom_call.1']
    #allocation4 [shape = 's32[1]{0}', space=sflag, size = 0x4, scoped, tag = 'scoped memory for tpu_custom_call.1']
    #allocation5 [shape = 'u8[4096]{0}', space=vmem, size = 0x1000, scoped, tag = 'input window, operand 1, single buffered']
    #allocation6 [shape = 's32[1]{0}', space=sflag, size = 0x4, scoped, tag = 'scoped memory for tpu_custom_call.1']
    #allocation7 [shape = 'u8[4096]{0}', space=vmem, size = 0x1000, scoped, tag = 'output window, operand 0, single buffered']
    #allocation8 [shape = 'u8[4096]{0}', space=vmem, size = 0x1000, scoped, tag = 'output window, operand 1, single buffered']
    #allocation9 [shape = 's32[1]{0}', space=sflag, size = 0x4, scoped, tag = 'scoped memory for tpu_custom_call.1']
    #allocation10 [shape = 'u8[4096]{0}', space=vmem, size = 0x1000, scoped, tag = 'output window, operand 2, single buffered']
    %10 = vsyncpa [#allocation3], 0
    %11 = vsyncpa [#allocation6], 0
    %12 = vsyncpa [#allocation4], 0
    %13 = vsyncpa [#allocation9], 0
    // Predicated region
    $region2: #{tpu_custom_call.1} parent=1 // pred_check
      _
    $region3: #{tpu_custom_call.1} parent=1 // pred_check_branch
      %15 = sbr.rel (0) target = $region5
    $region4: #{tpu_custom_call.1} parent=1 // pred_region
      %s16 = sadd.s32 0, 0
      %p17 = scmp.lt.s32.totalorder %s16, 0
      %s18 = scalar_select %p17, %s16, 0
      %s19 = smul.u32 4, %s18
      %s21 = ssub.s32 512, 512
      %22 = vsyncadd [#allocation3], %s21
      %s23 = smul.addr %s19, 128
      %s24 = scalar_lea.hbm %s0, %s23
      %s26 = sshll.u32 [#allocation2], 4
      %s27 = int_to_ptr.vmem [resolvable:$true] %s26
      %29 = dma.hbm_to_vmem [thread:$0]  %s24, 512, %s27, [#allocation3]
    $region5: #{tpu_custom_call.1} parent=1 // pred_fallthru
      _
    // Predicated region
    $region6: #{tpu_custom_call.1} parent=1 // pred_check
      _
    $region7: #{tpu_custom_call.1} parent=1 // pred_check_branch
      %31 = sbr.rel (0) target = $region9
    $region8: #{tpu_custom_call.1} parent=1 // pred_region
      %s32 = sadd.s32 0, 0
      %p33 = scmp.lt.s32.totalorder %s32, 0
      %s34 = scalar_select %p33, %s32, 0
      %s35 = smul.u32 4, %s34
      %s37 = ssub.s32 128, 128
      %38 = vsyncadd [#allocation6], %s37
      %s39 = smul.addr %s35, 32
      %s40 = scalar_lea.hbm %s1, %s39
      %s42 = sshll.u32 [#allocation5], 4
      %s43 = int_to_ptr.vmem [resolvable:$true] %s42
      %45 = dma.hbm_to_vmem [thread:$0]  %s40, 128, %s43, [#allocation6]
    $region9: #{tpu_custom_call.1} parent=1 // pred_fallthru
      _
    // Predicated region
    $region10: #{tpu_custom_call.1} parent=1 // pred_check
      _
    $region11: #{tpu_custom_call.1} parent=1 // pred_check_branch
      %47 = sbr.rel (0) target = $region13
    $region12: #{tpu_custom_call.1} parent=1 // pred_region
      %48 = dma.done [#allocation3], 512
    $region13: #{tpu_custom_call.1} parent=1 // pred_fallthru
      _
    // Predicated region
    $region14: #{tpu_custom_call.1} parent=1 // pred_check
      _
    $region15: #{tpu_custom_call.1} parent=1 // pred_check_branch
      %50 = sbr.rel (0) target = $region17
    $region16: #{tpu_custom_call.1} parent=1 // pred_region
      %51 = dma.done [#allocation6], 128
    $region17: #{tpu_custom_call.1} parent=1 // pred_fallthru
      _
    %s52 = sadd.s32 0, 0
    %p53 = scmp.lt.s32.totalorder %s52, 0
    %s54 = scalar_select %p53, %s52, 0
    %s55 = smul.u32 4, %s54
    %s56 = sadd.s32 0, 0
    %p57 = scmp.lt.s32.totalorder %s56, 0
    %s58 = scalar_select %p57, %s56, 0
    %s59 = smul.u32 4, %s58
    %p60 = scmp.eq.s32.totalorder 0, 0
    // Predicated region
    $region18: #{tpu_custom_call.1} parent=1 // pred_check
      %p61 = pneg %p60
    $region19: #{tpu_custom_call.1} parent=1 // pred_check_branch
      %63 = sbr.rel (%p61) target = $region21
    $region20: #{tpu_custom_call.1} parent=1 // pred_region
      %64 = vst [vmem:[#allocation7] sm:$0xff] 0.0
      %65 = vst [vmem:[#allocation8] sm:$0xff] 0.0
      %66 = vst [vmem:[#allocation10] sm:$0xff] 0.0
    $region21: #{tpu_custom_call.1} parent=1 // pred_fallthru
      _
    %v67 = vld [vmem:[#allocation2] sm:$0xff]
    %v68 = vld [vmem:[#allocation2 + $0x8] sm:$0xff]
    %v69 = vld [vmem:[#allocation2 + $0x10] sm:$0xff]
    %v70 = vld [vmem:[#allocation2 + $0x18] sm:$0xff]
    %v71 = vld [vmem:[#allocation5] sm:$0xff]
    %v72 = vunpack.c.0.s8 %v71
    %v73 = vunpack.c.1.s8 %v71
    %v74 = vunpack.c.2.s8 %v71
    %v75 = vunpack.c.3.s8 %v71
    %v76 = vcvt.s32.f32 %v72
    %v77 = vcvt.s32.f32 %v73
    %v78 = vcvt.s32.f32 %v74
    %v79 = vcvt.s32.f32 %v75
    %v80 = vmul.f32 %v67, %v76
    %v81 = vmul.f32 %v68, %v77
    %v82 = vmul.f32 %v69, %v78
    %v83 = vmul.f32 %v70, %v79
    %v84 = vld [vmem:[#allocation7] sm:$0xff]
    %v85 = vadd.f32 %v80, %v81
    %v86 = vadd.f32 %v85, %v82
    %v87 = vadd.f32 %v86, %v83
    %v88 = vadd.f32 %v84, %v87
    %89 = vst [vmem:[#allocation7] sm:$0xff] %v88
    %v90 = vld [vmem:[#allocation8] sm:$0xff]
    %v91 = vadd.f32 %v67, %v68
    %v92 = vadd.f32 %v91, %v69
    %v93 = vadd.f32 %v92, %v70
    %v94 = vadd.f32 %v90, %v93
    %95 = vst [vmem:[#allocation8] sm:$0xff] %v94
    %v96 = vld [vmem:[#allocation10] sm:$0xff]
    %v97 = vadd.f32 %v76, %v77
    %v98 = vadd.f32 %v97, %v78
    %v99 = vadd.f32 %v98, %v79
    %v100 = vadd.f32 %v96, %v99
    %101 = vst [vmem:[#allocation10] sm:$0xff] %v100
    // Predicated region
    $region22: #{tpu_custom_call.1} parent=1 // pred_check
      _
    $region23: #{tpu_custom_call.1} parent=1 // pred_check_branch
      %103 = sbr.rel (0) target = $region25
    $region24: #{tpu_custom_call.1} parent=1 // pred_region
      %s105 = ssub.s32 128, 128
      %106 = vsyncadd [#allocation4], %s105
      %s108 = sshll.u32 [#allocation7], 4
      %s109 = int_to_ptr.vmem [resolvable:$true] %s108
      %111 = dma.vmem_to_hbm [thread:$0]  %s109, 128, %s2, [#allocation4]
    $region25: #{tpu_custom_call.1} parent=1 // pred_fallthru
      _
    // Predicated region
    $region26: #{tpu_custom_call.1} parent=1 // pred_check
      _
    $region27: #{tpu_custom_call.1} parent=1 // pred_check_branch
      %113 = sbr.rel (0) target = $region29
    $region28: #{tpu_custom_call.1} parent=1 // pred_region
      %s115 = ssub.s32 128, 128
      %116 = vsyncadd [#allocation9], %s115
      %s118 = sshll.u32 [#allocation8], 4
      %s119 = int_to_ptr.vmem [resolvable:$true] %s118
      %121 = dma.vmem_to_hbm [thread:$0]  %s119, 128, %s3, [#allocation9]
    $region29: #{tpu_custom_call.1} parent=1 // pred_fallthru
      _
    // Predicated region
    $region30: #{tpu_custom_call.1} parent=1 // pred_check
      _
    $region31: #{tpu_custom_call.1} parent=1 // pred_check_branch
      %123 = sbr.rel (0) target = $region33
    $region32: #{tpu_custom_call.1} parent=1 // pred_region
      %s125 = ssub.s32 128, 128
      %126 = vsyncadd [#allocation9], %s125
      %s128 = sshll.u32 [#allocation10], 4
      %s129 = int_to_ptr.vmem [resolvable:$true] %s128
      %131 = dma.vmem_to_hbm [thread:$0]  %s129, 128, %s4, [#allocation9]
    $region33: #{tpu_custom_call.1} parent=1 // pred_fallthru
      _
    // Predicated region
    $region34: #{tpu_custom_call.1} parent=1 // pred_check
      _
    $region35: #{tpu_custom_call.1} parent=1 // pred_check_branch
      %133 = sbr.rel (0) target = $region37
    $region36: #{tpu_custom_call.1} parent=1 // pred_region
      %134 = dma.done [#allocation4], 128
    $region37: #{tpu_custom_call.1} parent=1 // pred_fallthru
      _
    // Predicated region
    $region38: #{tpu_custom_call.1} parent=1 // pred_check
      _
    $region39: #{tpu_custom_call.1} parent=1 // pred_check_branch
      %136 = sbr.rel (0) target = $region41
    $region40: #{tpu_custom_call.1} parent=1 // pred_region
      %137 = dma.done [#allocation9], 128
    $region41: #{tpu_custom_call.1} parent=1 // pred_fallthru
      _
    // Predicated region
    $region42: #{tpu_custom_call.1} parent=1 // pred_check
      _
    $region43: #{tpu_custom_call.1} parent=1 // pred_check_branch
      %139 = sbr.rel (0) target = $region45
    $region44: #{tpu_custom_call.1} parent=1 // pred_region
      %140 = dma.done [#allocation9], 128
    $region45: #{tpu_custom_call.1} parent=1 // pred_fallthru
      _
    %141 = vsyncpa [#allocation3], 1
    %142 = vsyncpa [#allocation6], 1
    %143 = vsyncpa [#allocation4], 1
    %144 = vsyncpa [#allocation9], 1

</llo_original>
